<compile_context>
chip_gen: v7x
topology: tpu7x:2x2x1
jax: 0.10.0
libtpu: 0.0.40
codegen_flags: <defaults>
</compile_context>

<pallas_src>
import functools

import jax
import jax.numpy as jnp
from jax import lax
from jax.experimental import pallas as pl
from jax.experimental.pallas import tpu as pltpu


# ----------------------------- Pallas kernel -------------------------------- #
def deconv_bn_act_kernel(x_ref, w_ref, gamma_ref, beta_ref, o_ref,
                         conv_ref, sum_ref, sq_ref, *, n_pix, eps, groups):
    """One grid step = one lane-aligned column tile of output "super-pixels".

    x_ref:     (CT, tile)    bf16  transposed im2col tile (rows = tap*Cin, cols = pixels)
    w_ref:     (G*Cout, CT)  bf16  phase-expanded, spatially flipped deconv weights
    gamma_ref: (Cout, 1)     f32   BatchNorm affine scale
    beta_ref:  (Cout, 1)     f32   BatchNorm affine shift
    o_ref:     (G*Cout, R)   f32   final output slab (written at the last step)
    conv_ref:  (G*Cout, R)   f32   VMEM scratch: raw conv results (resident across steps)
    sum_ref:   (G*Cout, 1)   f32   VMEM scratch: running per-(phase,channel) sum
    sq_ref:    (G*Cout, 1)   f32   VMEM scratch: running per-(phase,channel) sum of squares
    """
    step = pl.program_id(0)
    tile = x_ref.shape[1]
    c = gamma_ref.shape[0]

    @pl.when(step == 0)
    def _init():
        sum_ref[...] = jnp.zeros_like(sum_ref)
        sq_ref[...] = jnp.zeros_like(sq_ref)

    # Single MXU matmul per tile: (G*Cout, CT) x (CT, tile) -> (G*Cout, tile)
    # with f32 accumulation; pixels sit on the 128-wide lane dim (dense vregs).
    acc = jnp.dot(w_ref[...], x_ref[...], preferred_element_type=jnp.float32)

    col0 = pl.multiple_of(step * tile, 128)
    conv_ref[:, pl.ds(col0, tile)] = acc

    # One-pass BN statistics, accumulated across column tiles.
    sum_ref[...] += jnp.sum(acc, axis=1, keepdims=True)
    sq_ref[...] += jnp.sum(acc * acc, axis=1, keepdims=True)

    @pl.when(step == pl.num_programs(0) - 1)
    def _finalize():
        # Fold the stride^2 phase groups into per-channel batch statistics.
        s = sum_ref[0:c]
        q = sq_ref[0:c]
        for g in range(1, groups):
            s = s + sum_ref[g * c:(g + 1) * c]
            q = q + sq_ref[g * c:(g + 1) * c]
        inv_n = 1.0 / float(n_pix)
        mean = s * inv_n
        var = q * inv_n - mean * mean                    # biased var (train mode)
        scale = gamma_ref[...] * lax.rsqrt(var + eps)    # (Cout, 1), rsqrt -> EUP
        shift = beta_ref[...] - mean * scale             # (Cout, 1)
        # BN + ReLU folded into one FMA + max per element, per phase-group row block.
        for g in range(groups):
            blk = conv_ref[g * c:(g + 1) * c, :]
            o_ref[g * c:(g + 1) * c, :] = jnp.maximum(blk * scale + shift, 0.0)


# ------------------------- polyphase tap tables ------------------------------ #
def _polyphase_tables(K, stride, pad):
    """For each output phase p: flipped-kernel taps k and input offsets d with
       out[stride*t + p] += x[t + d] * w_flipped[k]."""
    p_corr = K - 1 - pad  # padding of the equivalent stride-1 correlation
    phase_taps, offsets = [], set()
    for p in range(stride):
        taps = []
        for k in range(K):
            if (p + k - p_corr) % stride == 0:
                d = (p + k - p_corr) // stride
                taps.append((k, d))
                offsets.add(d)
        phase_taps.append(taps)
    return phase_taps, sorted(offsets)


# ------------------------------- wrapper ------------------------------------ #
def deconv_block(x_nchw, w_t, gamma, beta, *, stride=2, kernel_size=4,
                 eps=1e-5, matmul_dtype=jnp.bfloat16):
    """Forward of DeConvBlock(in_c, out_c, is_bn=True, 'relu', kernel_size).

    x_nchw: (N, Cin, H, W);  w_t: (Cin, Cout, K, K) (PyTorch ConvTranspose2d weight);
    gamma/beta: (Cout,).  Returns (N, Cout, 2H, 2W)."""
    N, Cin, H, W = x_nchw.shape
    Cout = w_t.shape[1]
    K, S = kernel_size, stride
    pad = (K - 2) // 2
    Ho = (H - 1) * S - 2 * pad + K
    Wo = (W - 1) * S - 2 * pad + K
    assert S == 2 and Ho == S * H and Wo == S * W, "DeConvBlock uses stride=2, even K"

    phase_taps, D = _polyphase_tables(K, S, pad)
    nD = len(D)
    lo, hi = -min(D), max(D)
    G = S * S                  # output phases (pixel-shuffle groups)
    R = N * H * W              # output super-pixels (each expands to SxS pixels)
    CT = nD * nD * Cin         # contraction size of the fused matmul

    # --- transposed im2col (XLA glue), lane-dense: rows=(tap,cin), cols=pixels ---
    x_nhwc = jnp.transpose(x_nchw, (0, 2, 3, 1)).astype(jnp.float32)
    x_pad = jnp.pad(x_nhwc, ((0, 0), (lo, hi), (lo, hi), (0, 0)))
    views = [x_pad[:, lo + dy: lo + dy + H, lo + dx: lo + dx + W, :]
             for dy in D for dx in D]
    patches = jnp.stack(views, axis=0)                            # (T, N, H, W, Cin)
    patches = jnp.transpose(patches, (0, 4, 1, 2, 3)).reshape(CT, R)

    # --- phase-expanded, spatially flipped weight: (G*Cout, T*Cin) ---------------
    w2 = jnp.zeros((G * Cout, CT), jnp.float32)
    for py in range(S):
        for px in range(S):
            g = py * S + px
            for (ky, dy) in phase_taps[py]:
                for (kx, dx) in phase_taps[px]:
                    tap = D.index(dy) * nD + D.index(dx)
                    blk = jnp.transpose(w_t[:, :, K - 1 - ky, K - 1 - kx])  # (Cout, Cin)
                    w2 = w2.at[g * Cout:(g + 1) * Cout,
                               tap * Cin:(tap + 1) * Cin].set(blk.astype(jnp.float32))

    # pad the contraction dim to a sublane multiple (zero rows contribute nothing)
    CTp = ((CT + 7) // 8) * 8
    if CTp != CT:
        patches = jnp.pad(patches, ((0, CTp - CT), (0, 0)))
        w2 = jnp.pad(w2, ((0, 0), (0, CTp - CT)))

    # bf16 operands for the MXU (f32 accumulation in-kernel); BN math stays f32.
    patches = patches.astype(matmul_dtype)
    w2 = w2.astype(matmul_dtype)
    gamma2 = gamma.reshape(Cout, 1).astype(jnp.float32)
    beta2 = beta.reshape(Cout, 1).astype(jnp.float32)

    # lane-aligned column tile over the pixel axis (DMA / compute overlap)
    tile = R
    for cand in (2048, 1024, 512, 256, 128):
        if R % cand == 0 and R // cand >= 2:
            tile = cand
            break
    n_steps = R // tile

    out2 = pl.pallas_call(
        functools.partial(deconv_bn_act_kernel, n_pix=R * G, eps=eps, groups=G),
        out_shape=jax.ShapeDtypeStruct((G * Cout, R), jnp.float32),
        grid=(n_steps,),
        in_specs=[
            pl.BlockSpec((CTp, tile), lambda i: (0, i)),       # im2col column tile
            pl.BlockSpec((G * Cout, CTp), lambda i: (0, 0)),   # weights  (loaded once)
            pl.BlockSpec((Cout, 1), lambda i: (0, 0)),         # gamma    (loaded once)
            pl.BlockSpec((Cout, 1), lambda i: (0, 0)),         # beta     (loaded once)
        ],
        # whole output block, constant index -> written once at the last step
        out_specs=pl.BlockSpec((G * Cout, R), lambda i: (0, 0)),
        scratch_shapes=[
            pltpu.VMEM((G * Cout, R), jnp.float32),   # raw conv slab (BN needs all tiles)
            pltpu.VMEM((G * Cout, 1), jnp.float32),   # running sum
            pltpu.VMEM((G * Cout, 1), jnp.float32),   # running sum of squares
        ],
        compiler_params=pltpu.CompilerParams(
            # batch statistics are a cross-tile reduction -> "arbitrary" axis;
            # a 2-call conv/normalize split would enable a "parallel" axis (v7x 2-TC).
            dimension_semantics=("arbitrary",),
            vmem_limit_bytes=32 * 1024 * 1024,
        ),
    )(patches, w2, gamma2, beta2)

    # pixel-shuffle the phase groups back: (py,px,c, n,t,u) -> (n, c, 2t+py, 2u+px)
    out6 = out2.reshape(S, S, Cout, N, H, W)
    return jnp.transpose(out6, (3, 2, 4, 0, 5, 1)).reshape(N, Cout, Ho, Wo)


# --------------------------- pure-JAX reference ------------------------------ #
def deconv_block_ref(x_nchw, w_t, gamma, beta, *, stride=2, kernel_size=4,
                     eps=1e-5, matmul_dtype=jnp.bfloat16):
    """Direct scatter-based ConvTranspose2d + train-mode BN + ReLU.
    Conv operands get the same bf16 rounding the kernel's MXU operands get."""
    N, Cin, H, W = x_nchw.shape
    Cout = w_t.shape[1]
    K = kernel_size
    pad = (K - 2) // 2
    Ho = (H - 1) * stride - 2 * pad + K
    Wo = (W - 1) * stride - 2 * pad + K

    xq = x_nchw.astype(matmul_dtype).astype(jnp.float32)
    wq = w_t.astype(matmul_dtype).astype(jnp.float32)

    out = jnp.zeros((N, Cout, stride * (H - 1) + K, stride * (W - 1) + K), jnp.float32)
    for ky in range(K):
        for kx in range(K):
            contrib = jnp.einsum('nchw,cd->ndhw', xq, wq[:, :, ky, kx],
                                 precision=lax.Precision.HIGHEST)
            out = out.at[:, :,
                         ky:ky + stride * (H - 1) + 1:stride,
                         kx:kx + stride * (W - 1) + 1:stride].add(contrib)
    out = out[:, :, pad:pad + Ho, pad:pad + Wo]

    mean = out.mean(axis=(0, 2, 3), keepdims=True)
    var = ((out - mean) ** 2).mean(axis=(0, 2, 3), keepdims=True)
    y = (out - mean) / jnp.sqrt(var + eps)
    y = y * gamma.reshape(1, Cout, 1, 1) + beta.reshape(1, Cout, 1, 1)
    return jnp.maximum(y, 0.0)


# ---------------------------------- main ------------------------------------- #
if __name__ == "__main__":
    # DeConvBlock(in_channels=4, out_channels=8, is_bn=True, 'relu', kernel_size=4)
    N, Cin, H, W = 2, 4, 16, 16
    Cout, K = 8, 4

    key = jax.random.PRNGKey(0)
    kx_, kw_, kg_, kb_ = jax.random.split(key, 4)

    x = jax.random.normal(kx_, (N, Cin, H, W), jnp.float32)
    # ConvTranspose2d weight: (in_channels, out_channels, K, K); no bias (is_bn=True)
    w_t = 0.1 * jax.random.normal(kw_, (Cin, Cout, K, K), jnp.float32)
    gamma = 1.0 + 0.1 * jax.random.normal(kg_, (Cout,), jnp.float32)
    beta = 0.1 * jax.random.normal(kb_, (Cout,), jnp.float32)

    out = deconv_block(x, w_t, gamma, beta, stride=2, kernel_size=K)
    out = jax.block_until_ready(out)

    ref = deconv_block_ref(x, w_t, gamma, beta, stride=2, kernel_size=K)
    assert out.shape == (N, Cout, 2 * H, 2 * W), out.shape
    max_err = float(jnp.max(jnp.abs(out - ref)))
    assert jnp.allclose(out, ref, rtol=5e-4, atol=5e-4), max_err

    print("KERNEL_OK")
</pallas_src>

<mosaic_0001>
module attributes {stable_mosaic.version = 11 : i64} {
  func.func @deconv_bn_act_kernel(%arg0: i32, %arg1: memref<40x256xbf16, #tpu.memory_space<vmem>>, %arg2: memref<32x40xbf16, #tpu.memory_space<vmem>>, %arg3: memref<8x1xf32, #tpu.memory_space<vmem>>, %arg4: memref<8x1xf32, #tpu.memory_space<vmem>>, %arg5: memref<32x512xf32, #tpu.memory_space<vmem>>, %arg6: memref<32x512xf32, #tpu.memory_space<vmem>>, %arg7: memref<32x1xf32, #tpu.memory_space<vmem>>, %arg8: memref<32x1xf32, #tpu.memory_space<vmem>>) attributes {dimension_semantics = [#tpu.dimension_semantics<arbitrary>], iteration_bounds = array<i64: 2>, scalar_prefetch = 0 : i64, scratch_operands = 3 : i64, tpu.core_type = #tpu.core_type<tc>, window_params = [{transform_indices = @transform_0, window_bounds = array<i64: 40, 256>}, {pipeline_mode = #tpu.pipeline_mode<synchronous>, transform_indices = @transform_1, window_bounds = array<i64: 32, 40>}, {pipeline_mode = #tpu.pipeline_mode<synchronous>, transform_indices = @transform_2, window_bounds = array<i64: 8, 1>}, {pipeline_mode = #tpu.pipeline_mode<synchronous>, transform_indices = @transform_3, window_bounds = array<i64: 8, 1>}, {pipeline_mode = #tpu.pipeline_mode<synchronous>, transform_indices = @transform_4, window_bounds = array<i64: 32, 512>}]} {
    %c0_i32 = arith.constant 0 : i32
    %0 = arith.cmpi eq, %arg0, %c0_i32 : i32
    %1 = arith.extui %0 : i1 to i32
    %c0_i32_0 = arith.constant 0 : i32
    %2 = arith.cmpi ne, %1, %c0_i32_0 : i32
    scf.if %2 {
      %cst_16 = arith.constant 0.000000e+00 : f32
      %24 = vector.broadcast %cst_16 : f32 to vector<32x1xf32>
      %c0_17 = arith.constant 0 : index
      %c0_18 = arith.constant 0 : index
      %25 = vector.load %arg7[%c0_17, %c0_18] : memref<32x1xf32, #tpu.memory_space<vmem>>, vector<32x1xf32>
      tpu.vector_store %arg7[%c0_17, %c0_18], %24 {strides = array<i32>} : memref<32x1xf32, #tpu.memory_space<vmem>>, vector<32x1xf32>,
      %cst_19 = arith.constant 0.000000e+00 : f32
      %26 = vector.broadcast %cst_19 : f32 to vector<32x1xf32>
      %c0_20 = arith.constant 0 : index
      %c0_21 = arith.constant 0 : index
      %27 = vector.load %arg8[%c0_20, %c0_21] : memref<32x1xf32, #tpu.memory_space<vmem>>, vector<32x1xf32>
      tpu.vector_store %arg8[%c0_20, %c0_21], %26 {strides = array<i32>} : memref<32x1xf32, #tpu.memory_space<vmem>>, vector<32x1xf32>,
    } else {
    }
    %c0 = arith.constant 0 : index
    %c0_1 = arith.constant 0 : index
    %3 = vector.load %arg2[%c0, %c0_1] : memref<32x40xbf16, #tpu.memory_space<vmem>>, vector<32x40xbf16>
    %c0_2 = arith.constant 0 : index
    %c0_3 = arith.constant 0 : index
    %4 = vector.load %arg1[%c0_2, %c0_3] : memref<40x256xbf16, #tpu.memory_space<vmem>>, vector<40x256xbf16>
    %cst = arith.constant dense<0.000000e+00> : vector<32x256xf32>
    %5 = tpu.matmul %3, %4, %cst {dimension_numbers = #tpu.dot_dimension_numbers<[1], [0], [0], [1], [0, 0, 1, 1], [], []>} : vector<32x40xbf16>, vector<40x256xbf16>, vector<32x256xf32> -> vector<32x256xf32>
    %c256_i32 = arith.constant 256 : i32
    %6 = arith.muli %arg0, %c256_i32 : i32
    %7 = tpu.assume_multiple %6, 128 : i32
    %c0_4 = arith.constant 0 : index
    %8 = arith.index_cast %7 : i32 to index
    %9 = vector.load %arg6[%c0_4, %8] : memref<32x512xf32, #tpu.memory_space<vmem>>, vector<32x256xf32>
    tpu.vector_store %arg6[%c0_4, %8], %5 {strides = array<i32>} : memref<32x512xf32, #tpu.memory_space<vmem>>, vector<32x256xf32>,
    %c0_5 = arith.constant 0 : index
    %c0_6 = arith.constant 0 : index
    %10 = vector.load %arg7[%c0_5, %c0_6] : memref<32x1xf32, #tpu.memory_space<vmem>>, vector<32x1xf32>
    %cst_7 = arith.constant dense<0.000000e+00> : vector<32xf32>
    %11 = vector.multi_reduction <add>, %5, %cst_7 [1] : vector<32x256xf32> to vector<32xf32>
    %12 = vector.shape_cast %11 : vector<32xf32> to vector<32x1xf32>
    %13 = arith.addf %10, %12 : vector<32x1xf32>
    %c0_8 = arith.constant 0 : index
    %c0_9 = arith.constant 0 : index
    %14 = vector.load %arg7[%c0_8, %c0_9] : memref<32x1xf32, #tpu.memory_space<vmem>>, vector<32x1xf32>
    tpu.vector_store %arg7[%c0_8, %c0_9], %13 {strides = array<i32>} : memref<32x1xf32, #tpu.memory_space<vmem>>, vector<32x1xf32>,
    %c0_10 = arith.constant 0 : index
    %c0_11 = arith.constant 0 : index
    %15 = vector.load %arg8[%c0_10, %c0_11] : memref<32x1xf32, #tpu.memory_space<vmem>>, vector<32x1xf32>
    %16 = arith.mulf %5, %5 : vector<32x256xf32>
    %cst_12 = arith.constant dense<0.000000e+00> : vector<32xf32>
    %17 = vector.multi_reduction <add>, %16, %cst_12 [1] : vector<32x256xf32> to vector<32xf32>
    %18 = vector.shape_cast %17 : vector<32xf32> to vector<32x1xf32>
    %19 = arith.addf %15, %18 : vector<32x1xf32>
    %c0_13 = arith.constant 0 : index
    %c0_14 = arith.constant 0 : index
    %20 = vector.load %arg8[%c0_13, %c0_14] : memref<32x1xf32, #tpu.memory_space<vmem>>, vector<32x1xf32>
    tpu.vector_store %arg8[%c0_13, %c0_14], %19 {strides = array<i32>} : memref<32x1xf32, #tpu.memory_space<vmem>>, vector<32x1xf32>,
    %c1_i32 = arith.constant 1 : i32
    %21 = arith.cmpi eq, %arg0, %c1_i32 : i32
    %22 = arith.extui %21 : i1 to i32
    %c0_i32_15 = arith.constant 0 : i32
    %23 = arith.cmpi ne, %22, %c0_i32_15 : i32
    scf.if %23 {
      %c0_16 = arith.constant 0 : index
      %c0_17 = arith.constant 0 : index
      %24 = vector.load %arg7[%c0_16, %c0_17] : memref<32x1xf32, #tpu.memory_space<vmem>>, vector<8x1xf32>
      %c0_18 = arith.constant 0 : index
      %c0_19 = arith.constant 0 : index
      %25 = vector.load %arg8[%c0_18, %c0_19] : memref<32x1xf32, #tpu.memory_space<vmem>>, vector<8x1xf32>
      %c8 = arith.constant 8 : index
      %c0_20 = arith.constant 0 : index
      %26 = vector.load %arg7[%c8, %c0_20] : memref<32x1xf32, #tpu.memory_space<vmem>>, vector<8x1xf32>
      %27 = arith.addf %24, %26 : vector<8x1xf32>
      %c8_21 = arith.constant 8 : index
      %c0_22 = arith.constant 0 : index
      %28 = vector.load %arg8[%c8_21, %c0_22] : memref<32x1xf32, #tpu.memory_space<vmem>>, vector<8x1xf32>
      %29 = arith.addf %25, %28 : vector<8x1xf32>
      %c16 = arith.constant 16 : index
      %c0_23 = arith.constant 0 : index
      %30 = vector.load %arg7[%c16, %c0_23] : memref<32x1xf32, #tpu.memory_space<vmem>>, vector<8x1xf32>
      %31 = arith.addf %27, %30 : vector<8x1xf32>
      %c16_24 = arith.constant 16 : index
      %c0_25 = arith.constant 0 : index
      %32 = vector.load %arg8[%c16_24, %c0_25] : memref<32x1xf32, #tpu.memory_space<vmem>>, vector<8x1xf32>
      %33 = arith.addf %29, %32 : vector<8x1xf32>
      %c24 = arith.constant 24 : index
      %c0_26 = arith.constant 0 : index
      %34 = vector.load %arg7[%c24, %c0_26] : memref<32x1xf32, #tpu.memory_space<vmem>>, vector<8x1xf32>
      %35 = arith.addf %31, %34 : vector<8x1xf32>
      %c24_27 = arith.constant 24 : index
      %c0_28 = arith.constant 0 : index
      %36 = vector.load %arg8[%c24_27, %c0_28] : memref<32x1xf32, #tpu.memory_space<vmem>>, vector<8x1xf32>
      %37 = arith.addf %33, %36 : vector<8x1xf32>
      %cst_29 = arith.constant 4.8828125E-4 : f32
      %38 = vector.broadcast %cst_29 : f32 to vector<8x1xf32>
      %39 = arith.mulf %35, %38 : vector<8x1xf32>
      %cst_30 = arith.constant 4.8828125E-4 : f32
      %40 = vector.broadcast %cst_30 : f32 to vector<8x1xf32>
      %41 = arith.mulf %37, %40 : vector<8x1xf32>
      %42 = arith.mulf %39, %39 : vector<8x1xf32>
      %43 = arith.subf %41, %42 : vector<8x1xf32>
      %c0_31 = arith.constant 0 : index
      %c0_32 = arith.constant 0 : index
      %44 = vector.load %arg3[%c0_31, %c0_32] : memref<8x1xf32, #tpu.memory_space<vmem>>, vector<8x1xf32>
      %cst_33 = arith.constant 9.99999974E-6 : f32
      %45 = vector.broadcast %cst_33 : f32 to vector<8x1xf32>
      %46 = arith.addf %43, %45 : vector<8x1xf32>
      %47 = math.rsqrt %46 : vector<8x1xf32>
      %48 = arith.mulf %44, %47 : vector<8x1xf32>
      %c0_34 = arith.constant 0 : index
      %c0_35 = arith.constant 0 : index
      %49 = vector.load %arg4[%c0_34, %c0_35] : memref<8x1xf32, #tpu.memory_space<vmem>>, vector<8x1xf32>
      %50 = arith.mulf %39, %48 : vector<8x1xf32>
      %51 = arith.subf %49, %50 : vector<8x1xf32>
      %c0_36 = arith.constant 0 : index
      %c0_37 = arith.constant 0 : index
      %52 = vector.load %arg6[%c0_36, %c0_37] : memref<32x512xf32, #tpu.memory_space<vmem>>, vector<8x512xf32>
      %53 = vector.broadcast %48 : vector<8x1xf32> to vector<8x512xf32>
      %54 = arith.mulf %52, %53 : vector<8x512xf32>
      %55 = vector.broadcast %51 : vector<8x1xf32> to vector<8x512xf32>
      %56 = arith.addf %54, %55 : vector<8x512xf32>
      %cst_38 = arith.constant 0.000000e+00 : f32
      %57 = vector.broadcast %cst_38 : f32 to vector<8x512xf32>
      %58 = arith.maximumf %56, %57 : vector<8x512xf32>
      %c0_39 = arith.constant 0 : index
      %c0_40 = arith.constant 0 : index
      %59 = vector.load %arg5[%c0_39, %c0_40] : memref<32x512xf32, #tpu.memory_space<vmem>>, vector<8x512xf32>
      tpu.vector_store %arg5[%c0_39, %c0_40], %58 {strides = array<i32>} : memref<32x512xf32, #tpu.memory_space<vmem>>, vector<8x512xf32>,
      %c8_41 = arith.constant 8 : index
      %c0_42 = arith.constant 0 : index
      %60 = vector.load %arg6[%c8_41, %c0_42] : memref<32x512xf32, #tpu.memory_space<vmem>>, vector<8x512xf32>
      %61 = vector.broadcast %48 : vector<8x1xf32> to vector<8x512xf32>
      %62 = arith.mulf %60, %61 : vector<8x512xf32>
      %63 = vector.broadcast %51 : vector<8x1xf32> to vector<8x512xf32>
      %64 = arith.addf %62, %63 : vector<8x512xf32>
      %cst_43 = arith.constant 0.000000e+00 : f32
      %65 = vector.broadcast %cst_43 : f32 to vector<8x512xf32>
      %66 = arith.maximumf %64, %65 : vector<8x512xf32>
      %c8_44 = arith.constant 8 : index
      %c0_45 = arith.constant 0 : index
      %67 = vector.load %arg5[%c8_44, %c0_45] : memref<32x512xf32, #tpu.memory_space<vmem>>, vector<8x512xf32>
      tpu.vector_store %arg5[%c8_44, %c0_45], %66 {strides = array<i32>} : memref<32x512xf32, #tpu.memory_space<vmem>>, vector<8x512xf32>,
      %c16_46 = arith.constant 16 : index
      %c0_47 = arith.constant 0 : index
      %68 = vector.load %arg6[%c16_46, %c0_47] : memref<32x512xf32, #tpu.memory_space<vmem>>, vector<8x512xf32>
      %69 = vector.broadcast %48 : vector<8x1xf32> to vector<8x512xf32>
      %70 = arith.mulf %68, %69 : vector<8x512xf32>
      %71 = vector.broadcast %51 : vector<8x1xf32> to vector<8x512xf32>
      %72 = arith.addf %70, %71 : vector<8x512xf32>
      %cst_48 = arith.constant 0.000000e+00 : f32
      %73 = vector.broadcast %cst_48 : f32 to vector<8x512xf32>
      %74 = arith.maximumf %72, %73 : vector<8x512xf32>
      %c16_49 = arith.constant 16 : index
      %c0_50 = arith.constant 0 : index
      %75 = vector.load %arg5[%c16_49, %c0_50] : memref<32x512xf32, #tpu.memory_space<vmem>>, vector<8x512xf32>
      tpu.vector_store %arg5[%c16_49, %c0_50], %74 {strides = array<i32>} : memref<32x512xf32, #tpu.memory_space<vmem>>, vector<8x512xf32>,
      %c24_51 = arith.constant 24 : index
      %c0_52 = arith.constant 0 : index
      %76 = vector.load %arg6[%c24_51, %c0_52] : memref<32x512xf32, #tpu.memory_space<vmem>>, vector<8x512xf32>
      %77 = vector.broadcast %48 : vector<8x1xf32> to vector<8x512xf32>
      %78 = arith.mulf %76, %77 : vector<8x512xf32>
      %79 = vector.broadcast %51 : vector<8x1xf32> to vector<8x512xf32>
      %80 = arith.addf %78, %79 : vector<8x512xf32>
      %cst_53 = arith.constant 0.000000e+00 : f32
      %81 = vector.broadcast %cst_53 : f32 to vector<8x512xf32>
      %82 = arith.maximumf %80, %81 : vector<8x512xf32>
      %c24_54 = arith.constant 24 : index
      %c0_55 = arith.constant 0 : index
      %83 = vector.load %arg5[%c24_54, %c0_55] : memref<32x512xf32, #tpu.memory_space<vmem>>, vector<8x512xf32>
      tpu.vector_store %arg5[%c24_54, %c0_55], %82 {strides = array<i32>} : memref<32x512xf32, #tpu.memory_space<vmem>>, vector<8x512xf32>,
    } else {
    }
    return
  }
  func.func @transform_0(%arg0: i32) -> (i32, i32) {
    %c0_i32 = arith.constant 0 : i32
    %c0_i32_0 = arith.constant 0 : i32
    return %c0_i32, %arg0 : i32, i32
  }
  func.func @transform_1(%arg0: i32) -> (i32, i32) {
    %c0_i32 = arith.constant 0 : i32
    %c0_i32_0 = arith.constant 0 : i32
    %c0_i32_1 = arith.constant 0 : i32
    return %c0_i32, %c0_i32_0 : i32, i32
  }
  func.func @transform_2(%arg0: i32) -> (i32, i32) {
    %c0_i32 = arith.constant 0 : i32
    %c0_i32_0 = arith.constant 0 : i32
    %c0_i32_1 = arith.constant 0 : i32
    return %c0_i32, %c0_i32_0 : i32, i32
  }
  func.func @transform_3(%arg0: i32) -> (i32, i32) {
    %c0_i32 = arith.constant 0 : i32
    %c0_i32_0 = arith.constant 0 : i32
    %c0_i32_1 = arith.constant 0 : i32
    return %c0_i32, %c0_i32_0 : i32, i32
  }
  func.func @transform_4(%arg0: i32) -> (i32, i32) {
    %c0_i32 = arith.constant 0 : i32
    %c0_i32_0 = arith.constant 0 : i32
    %c0_i32_1 = arith.constant 0 : i32
    return %c0_i32, %c0_i32_0 : i32, i32
  }
}

</mosaic_0001>

<llo_original>
// kernel: tpu_custom_call.1
$region0: #{tpu_custom_call.1}
  #allocation0 [shape = 'u32[]', space=smem, size = 0x4, offset = 0x4, fixed_abs, tag = 'smem constant byte address 0x4 - core index']
  #allocation1 [shape = 'u32[144,128]{1,0:T(1,128)}', space=vmem, size = 0x12000, scoped, tag = 'internal scratch']
  #allocation2 [shape = 'f32[32,512]{1,0:T(8,128)}', space=vmem, size = 0x10000, scoped, tag = 'scratch operand']
  #allocation3 [shape = 'f32[32,1]{1,0:T(8,128)}', space=vmem, size = 0x4000, scoped, tag = 'scratch operand']
  #allocation4 [shape = 'f32[32,1]{1,0:T(8,128)}', space=vmem, size = 0x4000, scoped, tag = 'scratch operand']
  %s0 = inlined_call_operand.hbm [shape: bf16[40,512], index: 0, kind: input, shape index: {}]
  %s1 = inlined_call_operand.vmem [shape: bf16[32,40], index: 1, kind: input, shape index: {}]
  %s2 = inlined_call_operand.vmem [shape: f32[8,1], index: 2, kind: input, shape index: {}]
  %s3 = inlined_call_operand.vmem [shape: f32[8,1], index: 3, kind: input, shape index: {}]
  %s4 = inlined_call_operand.hbm [shape: f32[32,512], index: 4, kind: output, shape index: {}]
  %s5 = sld [smem:[#allocation0]]
  $region61: #{tpu_custom_call.1} parent=0
    _
  %s7 = ssub.s32 1, %s5
  %s8 = scalar_select 0, %s7, %s5
  $region1: #{tpu_custom_call.1} parent=0
    #allocation5 [shape = 'u8[40960]{0}', space=vmem, size = 0xa000, scoped, tag = 'input window, operand 0']
    #allocation6 [shape = 's32[2]{0}', space=sflag, size = 0x8, scoped, tag = 'scoped memory for tpu_custom_call.1']
    #allocation7 [shape = 's32[2]{0}', space=sflag, size = 0x8, scoped, tag = 'scoped memory for tpu_custom_call.1']
    #allocation8 [shape = 'u8[65536]{0}', space=vmem, size = 0x10000, scoped, tag = 'output window, operand 0, single buffered']
    %9 = vsyncpa [#allocation6], 0
    %s10 = scalar_lea.sflag [#allocation6], 1
    %11 = vsyncpa %s10, 0
    %12 = vsyncpa [#allocation7], 0
    loop: start=0, step=1, limit=4
    $region2: #{tpu_custom_call.1} parent=1 // loop_pre_header
      _
    $region3: #{tpu_custom_call.1} parent=1 // loop_header
      %s14 = sphi 0, %s18
      %p15 = scmp.ge.s32.totalorder %s14, 4
      %s24 = sphi 0, %s26
      %s27 = sphi 0, %s24
      %s28 = sphi 0, %s27
      %s44 = sphi 0, %s28
      %s48 = sphi 0, %s48
      %s50 = sphi 0, %s48
      %s51 = sphi 0, %s50
      %s65 = sphi 0, %s51
      %s69 = sphi 0, %s69
      %s71 = sphi 0, %s69
      %s72 = sphi 0, %s71
      %s86 = sphi 0, %s72
      %s90 = sphi 0, %s90
      %s92 = sphi 0, %s90
      %s93 = sphi 0, %s92
      %s107 = sphi 0, %s93
      %s111 = sphi 0, %s111
      %s113 = sphi 0, %s111
      %s114 = sphi 0, %s113
      %s128 = sphi 0, %s114
    $region4: #{tpu_custom_call.1} parent=1 // loop_header_branch
      %17 = sbr.rel (%p15) target = $region8
    $region5: #{tpu_custom_call.1} parent=1 // loop_body
      %s19 = ssub.s32 %s14, 1
      %s20 = ssub.s32 %s14, 2
      %s21 = sadd.s32 %s14, 1
      %s22 = ssub.s32 %s14, %s21
      %p23 = scmp.eq.s32.totalorder %s22, 0
      %s25 = sadd.s32 %s24, 1
      %s26 = scalar_select %p23, %s24, %s25
      %p29 = pneg %p23
      %p30 = scmp.eq.s32.totalorder %s14, 1
      %p31 = por %p29, %p30
      %p32 = scmp.ne.s32.totalorder %s24, %s27
      %p33 = scmp.eq.s32.totalorder %s14, 0
      %p34 = por %p32, %p33
      %p35 = scmp.ne.s32.totalorder %s24, %s27
      %p36 = scmp.eq.s32.totalorder %s19, 1
      %p37 = por %p35, %p36
      %p38 = scmp.ne.s32.totalorder %s27, %s28
      %p39 = scmp.eq.s32.totalorder %s19, 0
      %p40 = por %p38, %p39
      %p41 = scmp.ne.s32.totalorder %s27, %s28
      %p42 = scmp.eq.s32.totalorder %s20, 1
      %p43 = por %p41, %p42
      %p45 = scmp.ne.s32.totalorder %s28, %s44
      %p46 = scmp.eq.s32.totalorder %s20, 0
      %p47 = por %p45, %p46
      %s49 = sadd.s32 %s48, 1
      %p52 = scmp.eq.s32.totalorder %s14, 1
      %p53 = scmp.ne.s32.totalorder %s48, %s50
      %p54 = scmp.eq.s32.totalorder %s14, 0
      %p55 = por %p53, %p54
      %p56 = scmp.ne.s32.totalorder %s48, %s50
      %p57 = scmp.eq.s32.totalorder %s19, 1
      %p58 = por %p56, %p57
      %p59 = scmp.ne.s32.totalorder %s50, %s51
      %p60 = scmp.eq.s32.totalorder %s19, 0
      %p61 = por %p59, %p60
      %p62 = scmp.ne.s32.totalorder %s50, %s51
      %p63 = scmp.eq.s32.totalorder %s20, 1
      %p64 = por %p62, %p63
      %p66 = scmp.ne.s32.totalorder %s51, %s65
      %p67 = scmp.eq.s32.totalorder %s20, 0
      %p68 = por %p66, %p67
      %s70 = sadd.s32 %s69, 1
      %p73 = scmp.eq.s32.totalorder %s14, 1
      %p74 = scmp.ne.s32.totalorder %s69, %s71
      %p75 = scmp.eq.s32.totalorder %s14, 0
      %p76 = por %p74, %p75
      %p77 = scmp.ne.s32.totalorder %s69, %s71
      %p78 = scmp.eq.s32.totalorder %s19, 1
      %p79 = por %p77, %p78
      %p80 = scmp.ne.s32.totalorder %s71, %s72
      %p81 = scmp.eq.s32.totalorder %s19, 0
      %p82 = por %p80, %p81
      %p83 = scmp.ne.s32.totalorder %s71, %s72
      %p84 = scmp.eq.s32.totalorder %s20, 1
      %p85 = por %p83, %p84
      %p87 = scmp.ne.s32.totalorder %s72, %s86
      %p88 = scmp.eq.s32.totalorder %s20, 0
      %p89 = por %p87, %p88
      %s91 = sadd.s32 %s90, 1
      %p94 = scmp.eq.s32.totalorder %s14, 1
      %p95 = scmp.ne.s32.totalorder %s90, %s92
      %p96 = scmp.eq.s32.totalorder %s14, 0
      %p97 = por %p95, %p96
      %p98 = scmp.ne.s32.totalorder %s90, %s92
      %p99 = scmp.eq.s32.totalorder %s19, 1
      %p100 = por %p98, %p99
      %p101 = scmp.ne.s32.totalorder %s92, %s93
      %p102 = scmp.eq.s32.totalorder %s19, 0
      %p103 = por %p101, %p102
      %p104 = scmp.ne.s32.totalorder %s92, %s93
      %p105 = scmp.eq.s32.totalorder %s20, 1
      %p106 = por %p104, %p105
      %p108 = scmp.ne.s32.totalorder %s93, %s107
      %p109 = scmp.eq.s32.totalorder %s20, 0
      %p110 = por %p108, %p109
      %s112 = sadd.s32 %s111, 1
      %p115 = scmp.eq.s32.totalorder %s14, 1
      %p116 = scmp.ne.s32.totalorder %s111, %s113
      %p117 = scmp.eq.s32.totalorder %s14, 0
      %p118 = por %p116, %p117
      %p119 = scmp.ne.s32.totalorder %s111, %s113
      %p120 = scmp.eq.s32.totalorder %s19, 1
      %p121 = por %p119, %p120
      %p122 = scmp.ne.s32.totalorder %s113, %s114
      %p123 = scmp.eq.s32.totalorder %s19, 0
      %p124 = por %p122, %p123
      %p125 = scmp.ne.s32.totalorder %s113, %s114
      %p126 = scmp.eq.s32.totalorder %s20, 1
      %p127 = por %p125, %p126
      %p129 = scmp.ne.s32.totalorder %s114, %s128
      %p130 = scmp.eq.s32.totalorder %s20, 0
      %p131 = por %p129, %p130
      %p132 = scmp.le.s32.totalorder 1, %s14
      %p133 = scmp.lt.s32.totalorder %s14, 3
      %p134 = pnand %p132, %p133
      %p135 = pneg %p134
      // Predicated region
      $region9: #{tpu_custom_call.1} parent=5 // pred_check
        _
      $region10: #{tpu_custom_call.1} parent=5 // pred_check_branch
        %137 = sbr.rel (%p134) target = $region12
      $region11: #{tpu_custom_call.1} parent=5 // pred_region
        %s138 = ssub.s32 %s14, 1
        // Predicated region
        $region13: #{tpu_custom_call.1} parent=11 // pred_check
          %p139 = pneg %p61
        $region14: #{tpu_custom_call.1} parent=11 // pred_check_branch
          %141 = sbr.rel (%p139) target = $region16
        $region15: #{tpu_custom_call.1} parent=11 // pred_region
          _
        $region16: #{tpu_custom_call.1} parent=11 // pred_fallthru
          _
        // Predicated region
        $region17: #{tpu_custom_call.1} parent=11 // pred_check
          %p142 = pneg %p82
        $region18: #{tpu_custom_call.1} parent=11 // pred_check_branch
          %144 = sbr.rel (%p142) target = $region20
        $region19: #{tpu_custom_call.1} parent=11 // pred_region
          _
        $region20: #{tpu_custom_call.1} parent=11 // pred_fallthru
          _
        // Predicated region
        $region21: #{tpu_custom_call.1} parent=11 // pred_check
          %p145 = pneg %p103
        $region22: #{tpu_custom_call.1} parent=11 // pred_check_branch
          %147 = sbr.rel (%p145) target = $region24
        $region23: #{tpu_custom_call.1} parent=11 // pred_region
          _
        $region24: #{tpu_custom_call.1} parent=11 // pred_fallthru
          _
      $region12: #{tpu_custom_call.1} parent=5 // pred_fallthru
        _
      %p148 = scmp.lt.s32.totalorder %s14, 2
      // Predicated region
      $region25: #{tpu_custom_call.1} parent=5 // pred_check
        %p149 = pneg %p148
      $region26: #{tpu_custom_call.1} parent=5 // pred_check_branch
        %151 = sbr.rel (%p149) target = $region28
      $region27: #{tpu_custom_call.1} parent=5 // pred_region
        // Predicated region
        $region29: #{tpu_custom_call.1} parent=27 // pred_check
          %p152 = pneg %p34
        $region30: #{tpu_custom_call.1} parent=27 // pred_check_branch
          %154 = sbr.rel (%p152) target = $region32
        $region31: #{tpu_custom_call.1} parent=27 // pred_region
          %s155 = sand.u32 %s24, 1
          %s156 = scalar_lea.sflag [#allocation6], %s155
          %s157 = sand.u32 %s24, 1
          %s158 = smul.addr %s157, 40
          %s159 = scalar_lea.vmem [#allocation5], %s158
          %s160 = smul.u32 2, %s14
          %s162 = ssub.s32 640, 640
          %163 = vsyncadd %s156, %s162
          %s164 = smul.addr %s160, 64
          %s165 = scalar_lea.hbm %s0, %s164
          %s166 = sshll.u32 %s159, 4
          %s167 = int_to_ptr.vmem [resolvable:$true] %s166
          %172 = dma.hbm_to_vmem [thread:$0]  %s165, 640, %s167, %s156, 256, 128, 8
        $region32: #{tpu_custom_call.1} parent=27 // pred_fallthru
          _
      $region28: #{tpu_custom_call.1} parent=5 // pred_fallthru
        _
      %p173 = scmp.le.s32.totalorder 1, %s14
      %p174 = scmp.lt.s32.totalorder %s14, 3
      %p175 = pnand %p173, %p174
      %p176 = pneg %p175
      // Predicated region
      $region33: #{tpu_custom_call.1} parent=5 // pred_check
        _
      $region34: #{tpu_custom_call.1} parent=5 // pred_check_branch
        %178 = sbr.rel (%p175) target = $region36
      $region35: #{tpu_custom_call.1} parent=5 // pred_region
        %s179 = ssub.s32 %s14, 1
        %s180 = sand.u32 %s27, 1
        %s181 = scalar_lea.sflag [#allocation6], %s180
        %s182 = sand.u32 %s27, 1
        %s183 = smul.addr %s182, 40
        %s184 = scalar_lea.vmem [#allocation5], %s183
        // Predicated region
        $region37: #{tpu_custom_call.1} parent=35 // pred_check
          %p185 = pneg %p40
        $region38: #{tpu_custom_call.1} parent=35 // pred_check_branch
          %187 = sbr.rel (%p185) target = $region40
        $region39: #{tpu_custom_call.1} parent=35 // pred_region
          %188 = dma.done %s181, 640
        $region40: #{tpu_custom_call.1} parent=35 // pred_fallthru
          _
        %s189 = sand.u32 %s27, 1
        %s190 = scalar_lea.sflag [#allocation6], %s189
        %s191 = sand.u32 %s27, 1
        %s192 = smul.addr %s191, 40
        %s193 = scalar_lea.vmem [#allocation5], %s192
        %p194 = pneg %p40
        %p195 = pneg %p37
        %p196 = pneg %p61
        %p197 = pneg %p58
        %p198 = pneg %p82
        %p199 = pneg %p79
        %p200 = pneg %p103
        %p201 = pneg %p100
        %p202 = pneg %p124
        %p203 = pneg %p121
        %s204 = smul.u32 2, %s19
        %p206 = scmp.eq.s32.totalorder %s19, 0
        // Predicated region
        $region41: #{tpu_custom_call.1} parent=35 // pred_check
          %p207 = pneg %p206
        $region42: #{tpu_custom_call.1} parent=35 // pred_check_branch
          %209 = sbr.rel (%p207) target = $region44
        $region43: #{tpu_custom_call.1} parent=35 // pred_region
          %vm210 = vcmask 7168
          %211 = vst.msk [vmem:[#allocation3] sm:$0xff] %vm210, 0.0
          %212 = vst.msk [vmem:[#allocation3 + $0x8] sm:$0xff] %vm210, 0.0
          %213 = vst.msk [vmem:[#allocation3 + $0x10] sm:$0xff] %vm210, 0.0
          %214 = vst.msk [vmem:[#allocation3 + $0x18] sm:$0xff] %vm210, 0.0
          %215 = vst.msk [vmem:[#allocation4] sm:$0xff] %vm210, 0.0
          %216 = vst.msk [vmem:[#allocation4 + $0x8] sm:$0xff] %vm210, 0.0
          %217 = vst.msk [vmem:[#allocation4 + $0x10] sm:$0xff] %vm210, 0.0
          %218 = vst.msk [vmem:[#allocation4 + $0x18] sm:$0xff] %vm210, 0.0
        $region44: #{tpu_custom_call.1} parent=35 // pred_fallthru
          _
        %v219 = vld [vmem:[%s1] sm:$0xf]
        %v220 = vld [vmem:[%s1 + $0x4] sm:$0xf]
        %v221 = vld [vmem:[%s1 + $0x8] sm:$0xf]
        %v222 = vld [vmem:[%s1 + $0xc] sm:$0xf]
        %v223 = vld [vmem:[%s184] sm:$0xff]
        %v224 = vld [vmem:[%s184 + $0x8] sm:$0xff]
        %v225 = vld [vmem:[%s184 + $0x10] sm:$0xff]
        %v226 = vld [vmem:[%s184 + $0x18] sm:$0xff]
        %v227 = vld [vmem:[%s184 + $0x20] sm:$0xff]
        %v232 = vunpack.c.l.b16 %v219
        %v233 = vunpack.c.l.b16 %v220
        %v234 = vunpack.c.l.b16 %v221
        %v235 = vunpack.c.l.b16 %v222
        %v236 = vpack.c.b16 %v233, %v232
        %v237 = vpack.c.b16 %v235, %v234
        %v243 = vunpack.c.l.b16 %v223
        %v244 = vunpack.c.h.b16 %v223
        %v245 = vunpack.c.l.b16 %v224
        %v246 = vunpack.c.h.b16 %v224
        %v247 = vunpack.c.l.b16 %v225
        %v248 = vunpack.c.h.b16 %v225
        %v249 = vunpack.c.l.b16 %v226
        %v250 = vunpack.c.h.b16 %v226
        %v251 = vunpack.c.l.b16 %v227
        %v252 = vunpack.c.h.b16 %v227
        %v253 = vpack.c.b16 %v245, %v243
        %v254 = vpack.c.b16 %v246, %v244
        %v255 = vpack.c.b16 %v249, %v247
        %v256 = vpack.c.b16 %v250, %v248
        %v257 = vpack.c.b16 %v251, %v251
        %v258 = vpack.c.b16 %v252, %v252
        %vm263 = vcmask 326656
        %v265 = vsel %vm263, %v236, 0
        %v268 = vsel %vm263, %v237, 0
        %vm270 = vcmask 1043456
        %v272 = vsel %vm270, %v257, 0
        %v275 = vsel %vm270, %v258, 0
        %277 = vmatprep.subr.bf16.mxu0 %v254
        %278 = vmatpush1.bf16.msra.mxu0 %v253
        %279 = vmatprep.subr.bf16.mxu0 %v256
        %280 = vmatpush1.bf16.msra.mxu0 %v255
        %281 = vmatprep.subr.bf16.mxu0 %v275
        %282 = vmatpush1.bf16.msra.mxu0 %v272
        %283 = vmatprep.subr.bf16.mxu0 0
        %284 = vmatpush1.bf16.msra.mxu0 0
        %285 = vmatprep.subr.bf16.mxu0 0
        %286 = vmatpush1.bf16.msra.mxu0 0
        %287 = vmatprep.subr.bf16.mxu0 0
        %288 = vmatpush1.bf16.msra.mxu0 0
        %289 = vmatprep.subr.bf16.mxu0 0
        %290 = vmatpush1.bf16.msra.mxu0 0
        %291 = vmatprep.subr.bf16.mxu0 0
        %292 = vmatpush1.bf16.msra.mxu0 0
        %293 = vmatprep.subr.bf16.mxu0 0
        %294 = vmatpush1.bf16.msra.mxu0 0
        %295 = vmatprep.subr.bf16.mxu0 0
        %296 = vmatpush1.bf16.msra.mxu0 0
        %297 = vmatprep.subr.bf16.mxu0 0
        %298 = vmatpush1.bf16.msra.mxu0 0
        %299 = vmatprep.subr.bf16.mxu0 0
        %300 = vmatpush1.bf16.msra.mxu0 0
        %301 = vmatprep.subr.bf16.mxu0 0
        %302 = vmatpush1.bf16.msra.mxu0 0
        %303 = vmatprep.subr.bf16.mxu0 0
        %304 = vmatpush1.bf16.msra.mxu0 0
        %305 = vmatprep.subr.bf16.mxu0 0
        %306 = vmatpush1.bf16.msra.mxu0 0
        %307 = vmatprep.subr.bf16.mxu0 0
        %308 = vmatpush1.bf16.msra.mxu0 0
        %309 = vmatprep.mubr.bf16.mxu0 0
        %310 = vmatmul.mubr.bf16.gmra.mrb[0].mxu0 %v265
        %v311 = vpop.f32.mrb[0].mxu0
        %v312 = vadd.f32 0.0, %v311
        %v313 = vpop.f32.mrb[0].mxu0
        %v314 = vadd.f32 0.0, %v313
        %v315 = vpop.f32.mrb[0].mxu0
        %v316 = vadd.f32 0.0, %v315
        %v317 = vpop.f32.mrb[0].mxu0
        %v318 = vadd.f32 0.0, %v317
        %319 = vmatprep.mubr.bf16.mxu0 0
        %320 = vmatmul.mubr.bf16.gmra.mrb[0].mxu0 %v268
        %v321 = vpop.f32.mrb[0].mxu0
        %v322 = vadd.f32 0.0, %v321
        %v323 = vpop.f32.mrb[0].mxu0
        %v324 = vadd.f32 0.0, %v323
        %v325 = vpop.f32.mrb[0].mxu0
        %v326 = vadd.f32 0.0, %v325
        %v327 = vpop.f32.mrb[0].mxu0
        %v328 = vadd.f32 0.0, %v327
        %329 = vdwg.mxu0
        %s330 = smul.u32 %s19, 256
        %s331 = sshra.s32 %s330, 7
        %s332 = sand.u32 %s330, 127
        %s333 = smul.addr %s331, 8
        %s334 = scalar_lea.vmem [#allocation2], %s333
        %335 = vst [vmem:[%s334] sm:$0xff] %v312
        %336 = vst [vmem:[%s334 + $0x8] sm:$0xff] %v314
        %337 = vst [vmem:[%s334 + $0x20] sm:$0xff] %v316
        %338 = vst [vmem:[%s334 + $0x28] sm:$0xff] %v318
        %339 = vst [vmem:[%s334 + $0x40] sm:$0xff] %v322
        %340 = vst [vmem:[%s334 + $0x48] sm:$0xff] %v324
        %341 = vst [vmem:[%s334 + $0x60] sm:$0xff] %v326
        %342 = vst [vmem:[%s334 + $0x68] sm:$0xff] %v328
        %v343 = vld [vmem:[#allocation3] sm:$0xff]
        %v344 = vld [vmem:[#allocation3 + $0x8] sm:$0xff]
        %v345 = vld [vmem:[#allocation3 + $0x10] sm:$0xff]
        %v346 = vld [vmem:[#allocation3 + $0x18] sm:$0xff]
        %v347 = vadd.f32 %v312, %v314
        %348 = vadd.xlane.f32.xlu0 %v347
        %v349 = vpop.xlane.xlu0 %348
        %v350 = vadd.f32 %v316, %v318
        %351 = vadd.xlane.f32.xlu0 %v350
        %v352 = vpop.xlane.xlu0 %351
        %v353 = vadd.f32 %v322, %v324
        %354 = vadd.xlane.f32.xlu0 %v353
        %v355 = vpop.xlane.xlu0 %354
        %v356 = vadd.f32 %v326, %v328
        %357 = vadd.xlane.f32.xlu0 %v356
        %v358 = vpop.xlane.xlu0 %357
        %v359 = vadd.f32 %v343, %v349
        %v360 = vadd.f32 %v344, %v352
        %v361 = vadd.f32 %v345, %v355
        %v362 = vadd.f32 %v346, %v358
        %vm363 = vcmask 7168
        %364 = vst.msk [vmem:[#allocation3] sm:$0xff] %vm363, %v359
        %365 = vst.msk [vmem:[#allocation3 + $0x8] sm:$0xff] %vm363, %v360
        %366 = vst.msk [vmem:[#allocation3 + $0x10] sm:$0xff] %vm363, %v361
        %367 = vst.msk [vmem:[#allocation3 + $0x18] sm:$0xff] %vm363, %v362
        %v368 = vld [vmem:[#allocation4] sm:$0xff]
        %v369 = vld [vmem:[#allocation4 + $0x8] sm:$0xff]
        %v370 = vld [vmem:[#allocation4 + $0x10] sm:$0xff]
        %v371 = vld [vmem:[#allocation4 + $0x18] sm:$0xff]
        %v372 = vmul.f32 %v312, %v312
        %v373 = vmul.f32 %v314, %v314
        %v374 = vmul.f32 %v316, %v316
        %v375 = vmul.f32 %v318, %v318
        %v376 = vmul.f32 %v322, %v322
        %v377 = vmul.f32 %v324, %v324
        %v378 = vmul.f32 %v326, %v326
        %v379 = vmul.f32 %v328, %v328
        %v380 = vadd.f32 %v372, %v373
        %381 = vadd.xlane.f32.xlu0 %v380
        %v382 = vpop.xlane.xlu0 %381
        %v383 = vadd.f32 %v374, %v375
        %384 = vadd.xlane.f32.xlu0 %v383
        %v385 = vpop.xlane.xlu0 %384
        %v386 = vadd.f32 %v376, %v377
        %387 = vadd.xlane.f32.xlu0 %v386
        %v388 = vpop.xlane.xlu0 %387
        %v389 = vadd.f32 %v378, %v379
        %390 = vadd.xlane.f32.xlu0 %v389
        %v391 = vpop.xlane.xlu0 %390
        %v392 = vadd.f32 %v368, %v382
        %v393 = vadd.f32 %v369, %v385
        %v394 = vadd.f32 %v370, %v388
        %v395 = vadd.f32 %v371, %v391
        %396 = vst.msk [vmem:[#allocation4] sm:$0xff] %vm363, %v392
        %397 = vst.msk [vmem:[#allocation4 + $0x8] sm:$0xff] %vm363, %v393
        %398 = vst.msk [vmem:[#allocation4 + $0x10] sm:$0xff] %vm363, %v394
        %399 = vst.msk [vmem:[#allocation4 + $0x18] sm:$0xff] %vm363, %v395
        %p400 = scmp.eq.s32.totalorder %s19, 1
        // Predicated region
        $region45: #{tpu_custom_call.1} parent=35 // pred_check
          %p401 = pneg %p400
        $region46: #{tpu_custom_call.1} parent=35 // pred_check_branch
          %403 = sbr.rel (%p401) target = $region48
        $region47: #{tpu_custom_call.1} parent=35 // pred_region
          %v404 = vld [vmem:[#allocation3] sm:$0xff]
          %v405 = vld [vmem:[#allocation4] sm:$0xff]
          %v406 = vld [vmem:[#allocation3 + $0x8] sm:$0xff]
          %v407 = vadd.f32 %v404, %v406
          %v408 = vld [vmem:[#allocation4 + $0x8] sm:$0xff]
          %v409 = vadd.f32 %v405, %v408
          %v410 = vld [vmem:[#allocation3 + $0x10] sm:$0xff]
          %v411 = vadd.f32 %v407, %v410
          %v412 = vld [vmem:[#allocation4 + $0x10] sm:$0xff]
          %v413 = vadd.f32 %v409, %v412
          %v414 = vld [vmem:[#allocation3 + $0x18] sm:$0xff]
          %v415 = vadd.f32 %v411, %v414
          %v416 = vld [vmem:[#allocation4 + $0x18] sm:$0xff]
          %v417 = vadd.f32 %v413, %v416
          %v418 = vmul.f32 %v415, 0.00048828125
          %v419 = vmul.f32 %v417, 0.00048828125
          %v420 = vmul.f32 %v418, %v418
          %v421 = vsub.f32 %v419, %v420
          %v422 = vld [vmem:[%s2] sm:$0xff]
          %v423 = vadd.f32 %v421, 1e-05
          %v424 = vrsqrt.pop %v423
          %v425 = vmul.f32 %v422, %v424
          %v426 = vld [vmem:[%s3] sm:$0xff]
          %v427 = vmul.f32 %v418, %v425
          %v428 = vsub.f32 %v426, %v427
          %v429 = vld [vmem:[#allocation2] sm:$0xff]
          %v430 = vld [vmem:[#allocation2 + $0x8] sm:$0xff]
          %v431 = vld [vmem:[#allocation2 + $0x10] sm:$0xff]
          %v432 = vld [vmem:[#allocation2 + $0x18] sm:$0xff]
          %434 = vset.pattern.permute.xlu0 0
          %435 = vperm.xlu0 %434, %v425
          %v436 = vpop.permute.xlu0 %435
          %v438 = vmul.f32 %v429, %v436
          %v439 = vmul.f32 %v430, %v436
          %v440 = vmul.f32 %v431, %v436
          %v441 = vmul.f32 %v432, %v436
          %443 = vset.pattern.permute.xlu0 0
          %444 = vperm.xlu0 %443, %v428
          %v445 = vpop.permute.xlu0 %444
          %v447 = vadd.f32 %v438, %v445
          %v448 = vadd.f32 %v439, %v445
          %v449 = vadd.f32 %v440, %v445
          %v450 = vadd.f32 %v441, %v445
          %v451 = vmax.f32 %v447, 0.0
          %v452 = vmax.f32 %v448, 0.0
          %v453 = vmax.f32 %v449, 0.0
          %v454 = vmax.f32 %v450, 0.0
          %455 = vst [vmem:[#allocation8] sm:$0xff] %v451
          %456 = vst [vmem:[#allocation8 + $0x8] sm:$0xff] %v452
          %457 = vst [vmem:[#allocation8 + $0x10] sm:$0xff] %v453
          %458 = vst [vmem:[#allocation8 + $0x18] sm:$0xff] %v454
          %v459 = vld [vmem:[#allocation2 + $0x20] sm:$0xff]
          %v460 = vld [vmem:[#allocation2 + $0x28] sm:$0xff]
          %v461 = vld [vmem:[#allocation2 + $0x30] sm:$0xff]
          %v462 = vld [vmem:[#allocation2 + $0x38] sm:$0xff]
          %v463 = vmul.f32 %v459, %v436
          %v464 = vmul.f32 %v460, %v436
          %v465 = vmul.f32 %v461, %v436
          %v466 = vmul.f32 %v462, %v436
          %v467 = vadd.f32 %v463, %v445
          %v468 = vadd.f32 %v464, %v445
          %v469 = vadd.f32 %v465, %v445
          %v470 = vadd.f32 %v466, %v445
          %v471 = vmax.f32 %v467, 0.0
          %v472 = vmax.f32 %v468, 0.0
          %v473 = vmax.f32 %v469, 0.0
          %v474 = vmax.f32 %v470, 0.0
          %475 = vst [vmem:[#allocation8 + $0x20] sm:$0xff] %v471
          %476 = vst [vmem:[#allocation8 + $0x28] sm:$0xff] %v472
          %477 = vst [vmem:[#allocation8 + $0x30] sm:$0xff] %v473
          %478 = vst [vmem:[#allocation8 + $0x38] sm:$0xff] %v474
          %v479 = vld [vmem:[#allocation2 + $0x40] sm:$0xff]
          %v480 = vld [vmem:[#allocation2 + $0x48] sm:$0xff]
          %v481 = vld [vmem:[#allocation2 + $0x50] sm:$0xff]
          %v482 = vld [vmem:[#allocation2 + $0x58] sm:$0xff]
          %v483 = vmul.f32 %v479, %v436
          %v484 = vmul.f32 %v480, %v436
          %v485 = vmul.f32 %v481, %v436
          %v486 = vmul.f32 %v482, %v436
          %v487 = vadd.f32 %v483, %v445
          %v488 = vadd.f32 %v484, %v445
          %v489 = vadd.f32 %v485, %v445
          %v490 = vadd.f32 %v486, %v445
          %v491 = vmax.f32 %v487, 0.0
          %v492 = vmax.f32 %v488, 0.0
          %v493 = vmax.f32 %v489, 0.0
          %v494 = vmax.f32 %v490, 0.0
          %495 = vst [vmem:[#allocation8 + $0x40] sm:$0xff] %v491
          %496 = vst [vmem:[#allocation8 + $0x48] sm:$0xff] %v492
          %497 = vst [vmem:[#allocation8 + $0x50] sm:$0xff] %v493
          %498 = vst [vmem:[#allocation8 + $0x58] sm:$0xff] %v494
          %v499 = vld [vmem:[#allocation2 + $0x60] sm:$0xff]
          %v500 = vld [vmem:[#allocation2 + $0x68] sm:$0xff]
          %v501 = vld [vmem:[#allocation2 + $0x70] sm:$0xff]
          %v502 = vld [vmem:[#allocation2 + $0x78] sm:$0xff]
          %v503 = vmul.f32 %v499, %v436
          %v504 = vmul.f32 %v500, %v436
          %v505 = vmul.f32 %v501, %v436
          %v506 = vmul.f32 %v502, %v436
          %v507 = vadd.f32 %v503, %v445
          %v508 = vadd.f32 %v504, %v445
          %v509 = vadd.f32 %v505, %v445
          %v510 = vadd.f32 %v506, %v445
          %v511 = vmax.f32 %v507, 0.0
          %v512 = vmax.f32 %v508, 0.0
          %v513 = vmax.f32 %v509, 0.0
          %v514 = vmax.f32 %v510, 0.0
          %515 = vst [vmem:[#allocation8 + $0x60] sm:$0xff] %v511
          %516 = vst [vmem:[#allocation8 + $0x68] sm:$0xff] %v512
          %517 = vst [vmem:[#allocation8 + $0x70] sm:$0xff] %v513
          %518 = vst [vmem:[#allocation8 + $0x78] sm:$0xff] %v514
        $region48: #{tpu_custom_call.1} parent=35 // pred_fallthru
          _
        // Predicated region
        $region49: #{tpu_custom_call.1} parent=35 // pred_check
          %p519 = pneg %p121
        $region50: #{tpu_custom_call.1} parent=35 // pred_check_branch
          %521 = sbr.rel (%p519) target = $region52
        $region51: #{tpu_custom_call.1} parent=35 // pred_region
          %s523 = ssub.s32 2048, 2048
          %524 = vsyncadd [#allocation7], %s523
          %s525 = sshll.u32 [#allocation8], 4
          %s526 = int_to_ptr.vmem [resolvable:$true] %s525
          %531 = dma.vmem_to_hbm [thread:$0]  %s526, 2048, %s4, [#allocation7], 512, 512, 32
        $region52: #{tpu_custom_call.1} parent=35 // pred_fallthru
          _
        // Predicated region
        $region53: #{tpu_custom_call.1} parent=35 // pred_check
          %p532 = pneg %p121
        $region54: #{tpu_custom_call.1} parent=35 // pred_check_branch
          %534 = sbr.rel (%p532) target = $region56
        $region55: #{tpu_custom_call.1} parent=35 // pred_region
          %535 = dma.done [#allocation7], 2048
        $region56: #{tpu_custom_call.1} parent=35 // pred_fallthru
          _
      $region36: #{tpu_custom_call.1} parent=5 // pred_fallthru
        _
      %p536 = scmp.le.s32.totalorder 2, %s14
      // Predicated region
      $region57: #{tpu_custom_call.1} parent=5 // pred_check
        %p537 = pneg %p536
      $region58: #{tpu_custom_call.1} parent=5 // pred_check_branch
        %539 = sbr.rel (%p537) target = $region60
      $region59: #{tpu_custom_call.1} parent=5 // pred_region
        %s540 = ssub.s32 %s14, 2
      $region60: #{tpu_custom_call.1} parent=5 // pred_fallthru
        _
    $region6: #{tpu_custom_call.1} parent=1 // loop_footer
      %s18 = sadd.s32 1, %s14
    $region7: #{tpu_custom_call.1} parent=1 // loop_footer_branch
      %13 = sbr.rel target = $region3
    $region8: #{tpu_custom_call.1} parent=1 // loop_exit
      _
    %541 = vsyncpa [#allocation6], 1
    %s542 = scalar_lea.sflag [#allocation6], 1
    %543 = vsyncpa %s542, 1
    %544 = vsyncpa [#allocation7], 1
    %s545 = scalar_lea.sflag [#allocation7], 1
    %546 = vsyncpa %s545, 1

</llo_original>
